<compile_context>
chip_gen: v7x
topology: tpu7x:2x2x1
jax: 0.10.0
libtpu: 0.0.40
codegen_flags: <defaults>
</compile_context>

<pallas_src>
from functools import partial

import jax
import jax.numpy as jnp
from jax.experimental import pallas as pl
from jax.experimental.pallas import tpu as pltpu


_TB = 128        # ids per batch block (one lane-width; keeps >=2 blocks for v7x)
_TK_MAX = 2048   # items per streamed table block


def _round_up(x, m):
    return ((x + m - 1) // m) * m


def _popularity_kernel(ids_ref, w_ref, out_ref, acc_ref):
    # ids_ref : (TB, 1) int32  id column for this batch block
    # w_ref   : (1, TK) f32    lane-dense bias-table block (items k*TK .. k*TK+TK)
    # out_ref : (1, TB) f32    lane-dense output block (written only at last k)
    # acc_ref : (TB, 1) f32    VMEM scratch accumulator (resident across k)
    k = pl.program_id(1)
    tb = ids_ref.shape[0]
    tk = w_ref.shape[1]

    @pl.when(k == 0)
    def _init():
        acc_ref[...] = jnp.zeros_like(acc_ref)

    # Offset lives on the small (TB,1) operand, not the (TB,TK) tile.
    ids_rel = ids_ref[...] - k * tk                                    # (TB, 1)
    item_idx = jax.lax.broadcasted_iota(jnp.int32, (tb, tk), 1)        # (TB, TK)
    hit = ids_rel == item_idx                                          # (TB, TK)
    # Each id matches at most one item across all blocks and padded table rows
    # are zero, so summing partials over the item-grid axis is exact.
    acc_ref[...] += jnp.sum(hit.astype(jnp.float32) * w_ref[...],
                            axis=1, keepdims=True)                     # (TB, 1)

    @pl.when(k == pl.num_programs(1) - 1)
    def _finalize():
        out_ref[...] = jnp.transpose(acc_ref[...], (1, 0))             # (1, TB)


def prepare_item_bias_table(item_bias_table):
    """Flatten + zero-pad the bias table once (hoisted out of the hot path).

    Returns (w_2d, tk): w_2d is (1, n_pad) f32, tk is the static item-block size.
    """
    w_flat = jnp.asarray(item_bias_table, jnp.float32).reshape(-1)
    num_items = int(w_flat.shape[0])
    n_pad = _round_up(num_items, 128)
    if n_pad > _TK_MAX:
        n_pad = _round_up(n_pad, _TK_MAX)
        tk = _TK_MAX
    else:
        tk = n_pad
    w_2d = jnp.pad(w_flat, (0, n_pad - num_items)).reshape(1, n_pad)
    return w_2d, tk


@partial(jax.jit, static_argnames=("tk",))
def _popularity_forward_padded(item_ids, w_2d, *, tk):
    b = item_ids.shape[0]
    b_pad = _round_up(b, _TB)
    n_pad = w_2d.shape[1]

    # Ids as a column: no per-step lane<->sublane transpose inside the kernel.
    ids_col = jnp.pad(item_ids.astype(jnp.int32), (0, b_pad - b)).reshape(b_pad, 1)

    grid = (b_pad // _TB, n_pad // tk)

    out = pl.pallas_call(
        _popularity_kernel,
        out_shape=jax.ShapeDtypeStruct((1, b_pad), jnp.float32),
        grid_spec=pltpu.PrefetchScalarGridSpec(
            num_scalar_prefetch=0,
            grid=grid,
            in_specs=[
                pl.BlockSpec((_TB, 1), lambda bi, ki: (bi, 0)),   # ids column
                pl.BlockSpec((1, tk), lambda bi, ki: (0, ki)),    # table block
            ],
            out_specs=pl.BlockSpec((1, _TB), lambda bi, ki: (0, bi)),
            scratch_shapes=[pltpu.VMEM((_TB, 1), jnp.float32)],
        ),
        compiler_params=pltpu.CompilerParams(
            dimension_semantics=("parallel", "arbitrary")),
    )(ids_col, w_2d)

    # .flatten() in the PyTorch forward; drop the batch padding.
    return out[0, :b]


def popularity_net_forward(item_ids, item_bias_table):
    """item_ids: (B,) int; item_bias_table: (num_items, 1) or (num_items,) f32 -> (B,) f32.

    Note: out-of-range / negative ids silently return 0.0 (no bounds error like
    torch.nn.Embedding); padded batch lanes are sliced off.
    """
    w_2d, tk = prepare_item_bias_table(item_bias_table)
    return _popularity_forward_padded(item_ids, w_2d, tk=tk)


def make_popularity_net_params(num_items):
    """ZeroEmbedding(num_items, 1, padding_idx=0): all-zero weight table."""
    return jnp.zeros((num_items, 1), dtype=jnp.float32)


if __name__ == "__main__":
    key = jax.random.PRNGKey(0)
    num_items = 1000
    batch = 200

    id_key, tbl_key = jax.random.split(key)
    item_ids = jax.random.randint(id_key, (batch,), minval=0, maxval=num_items,
                                  dtype=jnp.int32)

    # 1) Exact module semantics: ZeroEmbedding -> all-zero biases.
    zero_table = make_popularity_net_params(num_items)
    scores = jax.block_until_ready(popularity_net_forward(item_ids, zero_table))
    assert scores.shape == (batch,)
    assert bool(jnp.all(scores == 0.0))

    # 2) Sanity-check the gather path with a deterministic non-zero table
    #    (same kernel; verifies embedding-lookup semantics incl. padding_idx row).
    nz_table = jax.random.normal(tbl_key, (num_items, 1), dtype=jnp.float32)
    nz_table = nz_table.at[0].set(0.0)  # padding_idx=0 row stays zero
    w_2d, tk = prepare_item_bias_table(nz_table)          # hoisted prepare step
    got = jax.block_until_ready(_popularity_forward_padded(item_ids, w_2d, tk=tk))
    ref = nz_table[item_ids].reshape(-1)
    assert jnp.allclose(got, ref, atol=1e-6), (got, ref)

    print("KERNEL_OK")
</pallas_src>

<mosaic_0001>
module attributes {stable_mosaic.version = 11 : i64} {
  func.func @_popularity_kernel(%arg0: i32, %arg1: i32, %arg2: memref<128x1xi32, #tpu.memory_space<vmem>>, %arg3: memref<1x1024xf32, #tpu.memory_space<vmem>>, %arg4: memref<1x128xf32, #tpu.memory_space<vmem>>, %arg5: memref<128x1xf32, #tpu.memory_space<vmem>>) attributes {dimension_semantics = [#tpu.dimension_semantics<parallel>, #tpu.dimension_semantics<arbitrary>], iteration_bounds = array<i64: 2, 1>, scalar_prefetch = 0 : i64, scratch_operands = 1 : i64, tpu.core_type = #tpu.core_type<tc>, window_params = [{transform_indices = @transform_0, window_bounds = array<i64: 128, 1>}, {transform_indices = @transform_1, window_bounds = array<i64: 1, 1024>}, {transform_indices = @transform_2, window_bounds = array<i64: 1, 128>}]} {
    %c0_i32 = arith.constant 0 : i32
    %0 = arith.cmpi eq, %arg1, %c0_i32 : i32
    %1 = arith.extui %0 : i1 to i32
    %c0_i32_0 = arith.constant 0 : i32
    %2 = arith.cmpi ne, %1, %c0_i32_0 : i32
    scf.if %2 {
      %cst_10 = arith.constant 0.000000e+00 : f32
      %23 = vector.broadcast %cst_10 : f32 to vector<128x1xf32>
      %c0_11 = arith.constant 0 : index
      %c0_12 = arith.constant 0 : index
      %24 = vector.load %arg5[%c0_11, %c0_12] : memref<128x1xf32, #tpu.memory_space<vmem>>, vector<128x1xf32>
      tpu.vector_store %arg5[%c0_11, %c0_12], %23 {strides = array<i32>} : memref<128x1xf32, #tpu.memory_space<vmem>>, vector<128x1xf32>,
    } else {
    }
    %c0 = arith.constant 0 : index
    %c0_1 = arith.constant 0 : index
    %3 = vector.load %arg2[%c0, %c0_1] : memref<128x1xi32, #tpu.memory_space<vmem>>, vector<128x1xi32>
    %c1024_i32 = arith.constant 1024 : i32
    %4 = arith.muli %arg1, %c1024_i32 : i32
    %5 = vector.broadcast %4 : i32 to vector<128x1xi32>
    %6 = arith.subi %3, %5 : vector<128x1xi32>
    %7 = tpu.iota {dimensions = array<i32: 1>} : vector<128x1024xi32>
    %8 = vector.broadcast %6 : vector<128x1xi32> to vector<128x1024xi32>
    %9 = arith.cmpi eq, %8, %7 : vector<128x1024xi32>
    %c0_2 = arith.constant 0 : index
    %c0_3 = arith.constant 0 : index
    %10 = vector.load %arg5[%c0_2, %c0_3] : memref<128x1xf32, #tpu.memory_space<vmem>>, vector<128x1xf32>
    %11 = arith.extui %9 : vector<128x1024xi1> to vector<128x1024xi32>
    %12 = arith.sitofp %11 : vector<128x1024xi32> to vector<128x1024xf32>
    %c0_4 = arith.constant 0 : index
    %c0_5 = arith.constant 0 : index
    %13 = vector.load %arg3[%c0_4, %c0_5] : memref<1x1024xf32, #tpu.memory_space<vmem>>, vector<1x1024xf32>
    %14 = vector.broadcast %13 : vector<1x1024xf32> to vector<128x1024xf32>
    %15 = arith.mulf %12, %14 : vector<128x1024xf32>
    %cst = arith.constant dense<0.000000e+00> : vector<128xf32>
    %16 = vector.multi_reduction <add>, %15, %cst [1] : vector<128x1024xf32> to vector<128xf32>
    %17 = vector.shape_cast %16 : vector<128xf32> to vector<128x1xf32>
    %18 = arith.addf %10, %17 : vector<128x1xf32>
    %c0_6 = arith.constant 0 : index
    %c0_7 = arith.constant 0 : index
    %19 = vector.load %arg5[%c0_6, %c0_7] : memref<128x1xf32, #tpu.memory_space<vmem>>, vector<128x1xf32>
    tpu.vector_store %arg5[%c0_6, %c0_7], %18 {strides = array<i32>} : memref<128x1xf32, #tpu.memory_space<vmem>>, vector<128x1xf32>,
    %c0_i32_8 = arith.constant 0 : i32
    %20 = arith.cmpi eq, %arg1, %c0_i32_8 : i32
    %21 = arith.extui %20 : i1 to i32
    %c0_i32_9 = arith.constant 0 : i32
    %22 = arith.cmpi ne, %21, %c0_i32_9 : i32
    scf.if %22 {
      %c0_10 = arith.constant 0 : index
      %c0_11 = arith.constant 0 : index
      %23 = vector.load %arg5[%c0_10, %c0_11] : memref<128x1xf32, #tpu.memory_space<vmem>>, vector<128x1xf32>
      %24 = tpu.transpose %23, [1, 0] : vector<128x1xf32> -> vector<1x128xf32>
      %c0_12 = arith.constant 0 : index
      %c0_13 = arith.constant 0 : index
      %25 = vector.load %arg4[%c0_12, %c0_13] : memref<1x128xf32, #tpu.memory_space<vmem>>, vector<1x128xf32>
      tpu.vector_store %arg4[%c0_12, %c0_13], %24 {strides = array<i32>} : memref<1x128xf32, #tpu.memory_space<vmem>>, vector<1x128xf32>,
    } else {
    }
    return
  }
  func.func @transform_0(%arg0: i32, %arg1: i32) -> (i32, i32) {
    %c0_i32 = arith.constant 0 : i32
    %c0_i32_0 = arith.constant 0 : i32
    return %arg0, %c0_i32 : i32, i32
  }
  func.func @transform_1(%arg0: i32, %arg1: i32) -> (i32, i32) {
    %c0_i32 = arith.constant 0 : i32
    %c0_i32_0 = arith.constant 0 : i32
    return %c0_i32, %arg1 : i32, i32
  }
  func.func @transform_2(%arg0: i32, %arg1: i32) -> (i32, i32) {
    %c0_i32 = arith.constant 0 : i32
    %c0_i32_0 = arith.constant 0 : i32
    return %c0_i32, %arg0 : i32, i32
  }
}

</mosaic_0001>

<llo_original>
// kernel: _popularity_forward_padded.1
$region0: #{_popularity_forward_padded.1}
  #allocation0 [shape = 'u32[]', space=smem, size = 0x4, offset = 0x4, fixed_abs, tag = 'smem constant byte address 0x4 - core index']
  #allocation1 [shape = 'u32[144,128]{1,0:T(1,128)}', space=vmem, size = 0x12000, scoped, tag = 'internal scratch']
  #allocation2 [shape = 'f32[128,1]{1,0:T(8,128)}', space=vmem, size = 0x10000, scoped, tag = 'scratch operand']
  %s0 = inlined_call_operand.vmem [shape: s32[256,1], index: 0, kind: input, shape index: {}]
  %s1 = inlined_call_operand.vmem [shape: f32[1,1024], index: 1, kind: input, shape index: {}]
  %s2 = inlined_call_operand.hbm [shape: f32[1,256], index: 2, kind: output, shape index: {}]
  %s3 = sld [smem:[#allocation0]]
  $region49: #{_popularity_forward_padded.1} parent=0
    _
  %s5 = ssub.s32 1, %s3
  %s6 = scalar_select 0, %s5, %s3
  $region1: #{_popularity_forward_padded.1} parent=0
    #allocation3 [shape = 'u8[1024]{0}', space=vmem, size = 0x400, scoped, tag = 'output window, operand 0']
    #allocation4 [shape = 's32[2]{0}', space=sflag, size = 0x8, scoped, tag = 'scoped memory for _popularity_forward_padded.1']
    %7 = vsyncpa [#allocation4], 0
    %s8 = scalar_lea.sflag [#allocation4], 1
    %9 = vsyncpa %s8, 0
    loop: start=0, step=1, limit=4
    $region2: #{_popularity_forward_padded.1} parent=1 // loop_pre_header
      _
    $region3: #{_popularity_forward_padded.1} parent=1 // loop_header
      %s11 = sphi 0, %s15
      %p12 = scmp.ge.s32.totalorder %s11, 4
      %s18 = sphi 0, %s30
      %s19 = sphi 0, %s26
      %s20 = sphi 0, %s18
      %s21 = sphi 0, %s19
      %s22 = sphi 0, %s20
      %s23 = sphi 0, %s21
      %s33 = sphi 0, %s35
      %s36 = sphi 0, %s33
      %s37 = sphi 0, %s36
      %s53 = sphi 0, %s37
      %s59 = sphi 0, %s61
      %s62 = sphi 0, %s59
      %s63 = sphi 0, %s62
      %s79 = sphi 0, %s63
      %s85 = sphi 0, %s87
      %s88 = sphi 0, %s85
      %s89 = sphi 0, %s88
      %s105 = sphi 0, %s89
    $region4: #{_popularity_forward_padded.1} parent=1 // loop_header_branch
      %14 = sbr.rel (%p12) target = $region8
    $region5: #{_popularity_forward_padded.1} parent=1 // loop_body
      %s16 = ssub.s32 %s11, 1
      %s17 = ssub.s32 %s11, 2
      %s24 = sadd.s32 1, %s19
      %p25 = scmp.ge.s32.totalorder %s24, 1
      %s26 = scalar_select %p25, 0, %s24
      %s27 = sadd.s32 1, %s18
      %s28 = scalar_select %p25, %s27, %s18
      %p29 = scmp.ge.s32.totalorder %s28, 2
      %s30 = scalar_select %p29, 0, %s28
      %s31 = ssub.s32 %s18, %s30
      %p32 = scmp.eq.s32.totalorder %s31, 0
      %s34 = sadd.s32 %s33, 1
      %s35 = scalar_select %p32, %s33, %s34
      %p38 = pneg %p32
      %p39 = scmp.eq.s32.totalorder %s11, 1
      %p40 = por %p38, %p39
      %p41 = scmp.ne.s32.totalorder %s33, %s36
      %p42 = scmp.eq.s32.totalorder %s11, 0
      %p43 = por %p41, %p42
      %p44 = scmp.ne.s32.totalorder %s33, %s36
      %p45 = scmp.eq.s32.totalorder %s16, 1
      %p46 = por %p44, %p45
      %p47 = scmp.ne.s32.totalorder %s36, %s37
      %p48 = scmp.eq.s32.totalorder %s16, 0
      %p49 = por %p47, %p48
      %p50 = scmp.ne.s32.totalorder %s36, %s37
      %p51 = scmp.eq.s32.totalorder %s17, 1
      %p52 = por %p50, %p51
      %p54 = scmp.ne.s32.totalorder %s37, %s53
      %p55 = scmp.eq.s32.totalorder %s17, 0
      %p56 = por %p54, %p55
      %s57 = ssub.s32 %s19, %s26
      %p58 = scmp.eq.s32.totalorder %s57, 0
      %s60 = sadd.s32 %s59, 1
      %s61 = scalar_select %p58, %s59, %s60
      %p64 = pneg %p58
      %p65 = scmp.eq.s32.totalorder %s11, 1
      %p66 = por %p64, %p65
      %p67 = scmp.ne.s32.totalorder %s59, %s62
      %p68 = scmp.eq.s32.totalorder %s11, 0
      %p69 = por %p67, %p68
      %p70 = scmp.ne.s32.totalorder %s59, %s62
      %p71 = scmp.eq.s32.totalorder %s16, 1
      %p72 = por %p70, %p71
      %p73 = scmp.ne.s32.totalorder %s62, %s63
      %p74 = scmp.eq.s32.totalorder %s16, 0
      %p75 = por %p73, %p74
      %p76 = scmp.ne.s32.totalorder %s62, %s63
      %p77 = scmp.eq.s32.totalorder %s17, 1
      %p78 = por %p76, %p77
      %p80 = scmp.ne.s32.totalorder %s63, %s79
      %p81 = scmp.eq.s32.totalorder %s17, 0
      %p82 = por %p80, %p81
      %s83 = ssub.s32 %s18, %s30
      %p84 = scmp.eq.s32.totalorder %s83, 0
      %s86 = sadd.s32 %s85, 1
      %s87 = scalar_select %p84, %s85, %s86
      %p90 = pneg %p84
      %p91 = scmp.eq.s32.totalorder %s11, 1
      %p92 = por %p90, %p91
      %p93 = scmp.ne.s32.totalorder %s85, %s88
      %p94 = scmp.eq.s32.totalorder %s11, 0
      %p95 = por %p93, %p94
      %p96 = scmp.ne.s32.totalorder %s85, %s88
      %p97 = scmp.eq.s32.totalorder %s16, 1
      %p98 = por %p96, %p97
      %p99 = scmp.ne.s32.totalorder %s88, %s89
      %p100 = scmp.eq.s32.totalorder %s16, 0
      %p101 = por %p99, %p100
      %p102 = scmp.ne.s32.totalorder %s88, %s89
      %p103 = scmp.eq.s32.totalorder %s17, 1
      %p104 = por %p102, %p103
      %p106 = scmp.ne.s32.totalorder %s89, %s105
      %p107 = scmp.eq.s32.totalorder %s17, 0
      %p108 = por %p106, %p107
      %p109 = scmp.le.s32.totalorder 1, %s11
      %p110 = scmp.lt.s32.totalorder %s11, 3
      %p111 = pnand %p109, %p110
      %p112 = pneg %p111
      // Predicated region
      $region9: #{_popularity_forward_padded.1} parent=5 // pred_check
        _
      $region10: #{_popularity_forward_padded.1} parent=5 // pred_check_branch
        %114 = sbr.rel (%p111) target = $region12
      $region11: #{_popularity_forward_padded.1} parent=5 // pred_region
        %s115 = ssub.s32 %s11, 1
        // Predicated region
        $region13: #{_popularity_forward_padded.1} parent=11 // pred_check
          %p116 = pneg %p75
        $region14: #{_popularity_forward_padded.1} parent=11 // pred_check_branch
          %118 = sbr.rel (%p116) target = $region16
        $region15: #{_popularity_forward_padded.1} parent=11 // pred_region
          %s119 = smul.u32 8, %s21
          %p120 = scmp.lt.s32.totalorder %s119, 7
          %s121 = scalar_select %p120, %s119, 7
          %s122 = scalar_lea.vmem %s1, %s121
          %s123 = smul.u32 8, %s21
        $region16: #{_popularity_forward_padded.1} parent=11 // pred_fallthru
          _
      $region12: #{_popularity_forward_padded.1} parent=5 // pred_fallthru
        _
      %p124 = scmp.lt.s32.totalorder %s11, 2
      // Predicated region
      $region17: #{_popularity_forward_padded.1} parent=5 // pred_check
        %p125 = pneg %p124
      $region18: #{_popularity_forward_padded.1} parent=5 // pred_check_branch
        %127 = sbr.rel (%p125) target = $region20
      $region19: #{_popularity_forward_padded.1} parent=5 // pred_region
        // Predicated region
        $region21: #{_popularity_forward_padded.1} parent=19 // pred_check
          %p128 = pneg %p43
        $region22: #{_popularity_forward_padded.1} parent=19 // pred_check_branch
          %130 = sbr.rel (%p128) target = $region24
        $region23: #{_popularity_forward_padded.1} parent=19 // pred_region
          %s131 = smul.u32 16, %s18
          %p132 = scmp.lt.s32.totalorder %s131, 31
          %s133 = scalar_select %p132, %s131, 31
          %s134 = smul.addr %s133, 8
          %s135 = scalar_lea.vmem %s0, %s134
          %s136 = smul.u32 16, %s18
        $region24: #{_popularity_forward_padded.1} parent=19 // pred_fallthru
          _
      $region20: #{_popularity_forward_padded.1} parent=5 // pred_fallthru
        _
      %p137 = scmp.le.s32.totalorder 1, %s11
      %p138 = scmp.lt.s32.totalorder %s11, 3
      %p139 = pnand %p137, %p138
      %p140 = pneg %p139
      // Predicated region
      $region25: #{_popularity_forward_padded.1} parent=5 // pred_check
        _
      $region26: #{_popularity_forward_padded.1} parent=5 // pred_check_branch
        %142 = sbr.rel (%p139) target = $region28
      $region27: #{_popularity_forward_padded.1} parent=5 // pred_region
        %s143 = ssub.s32 %s11, 1
        %s144 = smul.u32 16, %s20
        %p145 = scmp.lt.s32.totalorder %s144, 31
        %s146 = scalar_select %p145, %s144, 31
        %s147 = smul.addr %s146, 8
        %s148 = scalar_lea.vmem %s0, %s147
        %p149 = pneg %p49
        %p150 = pneg %p46
        %s151 = smul.u32 8, %s21
        %p152 = scmp.lt.s32.totalorder %s151, 7
        %s153 = scalar_select %p152, %s151, 7
        %s154 = scalar_lea.vmem %s1, %s153
        %p155 = pneg %p75
        %p156 = pneg %p72
        %p157 = pneg %p101
        %p158 = pneg %p98
        %s159 = sand.u32 %s88, 1
        %s160 = scalar_lea.sflag [#allocation4], %s159
        %s161 = sand.u32 %s88, 1
        %s162 = scalar_lea.vmem [#allocation3], %s161
        %s163 = smul.u32 16, %s20
        %p164 = scmp.lt.s32.totalorder %s163, 31
        %s165 = scalar_select %p164, %s163, 31
        %s166 = smul.addr %s165, 8
        %s167 = scalar_lea.vmem %s0, %s166
        %s168 = smul.u32 16, %s20
        %s169 = smul.u32 8, %s21
        %p170 = scmp.lt.s32.totalorder %s169, 7
        %s171 = scalar_select %p170, %s169, 7
        %s172 = scalar_lea.vmem %s1, %s171
        %s173 = smul.u32 8, %s21
        %p174 = scmp.eq.s32.totalorder %s21, 0
        // Predicated region
        $region29: #{_popularity_forward_padded.1} parent=27 // pred_check
          %p175 = pneg %p174
        $region30: #{_popularity_forward_padded.1} parent=27 // pred_check_branch
          %177 = sbr.rel (%p175) target = $region32
        $region31: #{_popularity_forward_padded.1} parent=27 // pred_region
          %vm178 = vcmask 7168
          %179 = vst.msk [vmem:[#allocation2] sm:$0xff] %vm178, 0.0
          %180 = vst.msk [vmem:[#allocation2 + $0x8] sm:$0xff] %vm178, 0.0
          %181 = vst.msk [vmem:[#allocation2 + $0x10] sm:$0xff] %vm178, 0.0
          %182 = vst.msk [vmem:[#allocation2 + $0x18] sm:$0xff] %vm178, 0.0
          %183 = vst.msk [vmem:[#allocation2 + $0x20] sm:$0xff] %vm178, 0.0
          %184 = vst.msk [vmem:[#allocation2 + $0x28] sm:$0xff] %vm178, 0.0
          %185 = vst.msk [vmem:[#allocation2 + $0x30] sm:$0xff] %vm178, 0.0
          %186 = vst.msk [vmem:[#allocation2 + $0x38] sm:$0xff] %vm178, 0.0
          %187 = vst.msk [vmem:[#allocation2 + $0x40] sm:$0xff] %vm178, 0.0
          %188 = vst.msk [vmem:[#allocation2 + $0x48] sm:$0xff] %vm178, 0.0
          %189 = vst.msk [vmem:[#allocation2 + $0x50] sm:$0xff] %vm178, 0.0
          %190 = vst.msk [vmem:[#allocation2 + $0x58] sm:$0xff] %vm178, 0.0
          %191 = vst.msk [vmem:[#allocation2 + $0x60] sm:$0xff] %vm178, 0.0
          %192 = vst.msk [vmem:[#allocation2 + $0x68] sm:$0xff] %vm178, 0.0
          %193 = vst.msk [vmem:[#allocation2 + $0x70] sm:$0xff] %vm178, 0.0
          %194 = vst.msk [vmem:[#allocation2 + $0x78] sm:$0xff] %vm178, 0.0
        $region32: #{_popularity_forward_padded.1} parent=27 // pred_fallthru
          _
        %v195 = vld [vmem:[%s167] sm:$0xff]
        %v196 = vld [vmem:[%s167 + $0x8] sm:$0xff]
        %v197 = vld [vmem:[%s167 + $0x10] sm:$0xff]
        %v198 = vld [vmem:[%s167 + $0x18] sm:$0xff]
        %v199 = vld [vmem:[%s167 + $0x20] sm:$0xff]
        %v200 = vld [vmem:[%s167 + $0x28] sm:$0xff]
        %v201 = vld [vmem:[%s167 + $0x30] sm:$0xff]
        %v202 = vld [vmem:[%s167 + $0x38] sm:$0xff]
        %v203 = vld [vmem:[%s167 + $0x40] sm:$0xff]
        %v204 = vld [vmem:[%s167 + $0x48] sm:$0xff]
        %v205 = vld [vmem:[%s167 + $0x50] sm:$0xff]
        %v206 = vld [vmem:[%s167 + $0x58] sm:$0xff]
        %v207 = vld [vmem:[%s167 + $0x60] sm:$0xff]
        %v208 = vld [vmem:[%s167 + $0x68] sm:$0xff]
        %v209 = vld [vmem:[%s167 + $0x70] sm:$0xff]
        %v210 = vld [vmem:[%s167 + $0x78] sm:$0xff]
        %s211 = smul.u32 %s21, 1024
        %v212 = vstv %s211
        %v213 = vsub.s32 %v195, %v212
        %v214 = vsub.s32 %v196, %v212
        %v215 = vsub.s32 %v197, %v212
        %v216 = vsub.s32 %v198, %v212
        %v217 = vsub.s32 %v199, %v212
        %v218 = vsub.s32 %v200, %v212
        %v219 = vsub.s32 %v201, %v212
        %v220 = vsub.s32 %v202, %v212
        %v221 = vsub.s32 %v203, %v212
        %v222 = vsub.s32 %v204, %v212
        %v223 = vsub.s32 %v205, %v212
        %v224 = vsub.s32 %v206, %v212
        %v225 = vsub.s32 %v207, %v212
        %v226 = vsub.s32 %v208, %v212
        %v227 = vsub.s32 %v209, %v212
        %v228 = vsub.s32 %v210, %v212
        %v229 = vlaneseq
        %v230 = vand.u32 %v229, 127
        %v231 = vadd.s32 %v230, 128
        %v232 = vadd.s32 %v230, 256
        %v233 = vadd.s32 %v230, 384
        %v234 = vadd.s32 %v230, 512
        %v235 = vadd.s32 %v230, 640
        %v236 = vadd.s32 %v230, 768
        %v237 = vadd.s32 %v230, 896
        %238 = vset.pattern.permute.xlu0 0
        %239 = vperm.xlu0 %238, %v213
        %v240 = vpop.permute.xlu0 %239
        %241 = vset.pattern.permute.xlu0 0
        %242 = vperm.xlu0 %241, %v214
        %v243 = vpop.permute.xlu0 %242
        %244 = vset.pattern.permute.xlu0 0
        %245 = vperm.xlu0 %244, %v215
        %v246 = vpop.permute.xlu0 %245
        %247 = vset.pattern.permute.xlu0 0
        %248 = vperm.xlu0 %247, %v216
        %v249 = vpop.permute.xlu0 %248
        %250 = vset.pattern.permute.xlu0 0
        %251 = vperm.xlu0 %250, %v217
        %v252 = vpop.permute.xlu0 %251
        %253 = vset.pattern.permute.xlu0 0
        %254 = vperm.xlu0 %253, %v218
        %v255 = vpop.permute.xlu0 %254
        %256 = vset.pattern.permute.xlu0 0
        %257 = vperm.xlu0 %256, %v219
        %v258 = vpop.permute.xlu0 %257
        %259 = vset.pattern.permute.xlu0 0
        %260 = vperm.xlu0 %259, %v220
        %v261 = vpop.permute.xlu0 %260
        %262 = vset.pattern.permute.xlu0 0
        %263 = vperm.xlu0 %262, %v221
        %v264 = vpop.permute.xlu0 %263
        %265 = vset.pattern.permute.xlu0 0
        %266 = vperm.xlu0 %265, %v222
        %v267 = vpop.permute.xlu0 %266
        %268 = vset.pattern.permute.xlu0 0
        %269 = vperm.xlu0 %268, %v223
        %v270 = vpop.permute.xlu0 %269
        %271 = vset.pattern.permute.xlu0 0
        %272 = vperm.xlu0 %271, %v224
        %v273 = vpop.permute.xlu0 %272
        %274 = vset.pattern.permute.xlu0 0
        %275 = vperm.xlu0 %274, %v225
        %v276 = vpop.permute.xlu0 %275
        %277 = vset.pattern.permute.xlu0 0
        %278 = vperm.xlu0 %277, %v226
        %v279 = vpop.permute.xlu0 %278
        %280 = vset.pattern.permute.xlu0 0
        %281 = vperm.xlu0 %280, %v227
        %v282 = vpop.permute.xlu0 %281
        %283 = vset.pattern.permute.xlu0 0
        %284 = vperm.xlu0 %283, %v228
        %v285 = vpop.permute.xlu0 %284
        %vm286 = vcmp.eq.s32.totalorder %v240, %v230
        %vm287 = vcmp.eq.s32.totalorder %v240, %v231
        %vm288 = vcmp.eq.s32.totalorder %v240, %v232
        %vm289 = vcmp.eq.s32.totalorder %v240, %v233
        %vm290 = vcmp.eq.s32.totalorder %v240, %v234
        %vm291 = vcmp.eq.s32.totalorder %v240, %v235
        %vm292 = vcmp.eq.s32.totalorder %v240, %v236
        %vm293 = vcmp.eq.s32.totalorder %v240, %v237
        %vm294 = vcmp.eq.s32.totalorder %v243, %v230
        %vm295 = vcmp.eq.s32.totalorder %v243, %v231
        %vm296 = vcmp.eq.s32.totalorder %v243, %v232
        %vm297 = vcmp.eq.s32.totalorder %v243, %v233
        %vm298 = vcmp.eq.s32.totalorder %v243, %v234
        %vm299 = vcmp.eq.s32.totalorder %v243, %v235
        %vm300 = vcmp.eq.s32.totalorder %v243, %v236
        %vm301 = vcmp.eq.s32.totalorder %v243, %v237
        %vm302 = vcmp.eq.s32.totalorder %v246, %v230
        %vm303 = vcmp.eq.s32.totalorder %v246, %v231
        %vm304 = vcmp.eq.s32.totalorder %v246, %v232
        %vm305 = vcmp.eq.s32.totalorder %v246, %v233
        %vm306 = vcmp.eq.s32.totalorder %v246, %v234
        %vm307 = vcmp.eq.s32.totalorder %v246, %v235
        %vm308 = vcmp.eq.s32.totalorder %v246, %v236
        %vm309 = vcmp.eq.s32.totalorder %v246, %v237
        %vm310 = vcmp.eq.s32.totalorder %v249, %v230
        %vm311 = vcmp.eq.s32.totalorder %v249, %v231
        %vm312 = vcmp.eq.s32.totalorder %v249, %v232
        %vm313 = vcmp.eq.s32.totalorder %v249, %v233
        %vm314 = vcmp.eq.s32.totalorder %v249, %v234
        %vm315 = vcmp.eq.s32.totalorder %v249, %v235
        %vm316 = vcmp.eq.s32.totalorder %v249, %v236
        %vm317 = vcmp.eq.s32.totalorder %v249, %v237
        %vm318 = vcmp.eq.s32.totalorder %v252, %v230
        %vm319 = vcmp.eq.s32.totalorder %v252, %v231
        %vm320 = vcmp.eq.s32.totalorder %v252, %v232
        %vm321 = vcmp.eq.s32.totalorder %v252, %v233
        %vm322 = vcmp.eq.s32.totalorder %v252, %v234
        %vm323 = vcmp.eq.s32.totalorder %v252, %v235
        %vm324 = vcmp.eq.s32.totalorder %v252, %v236
        %vm325 = vcmp.eq.s32.totalorder %v252, %v237
        %vm326 = vcmp.eq.s32.totalorder %v255, %v230
        %vm327 = vcmp.eq.s32.totalorder %v255, %v231
        %vm328 = vcmp.eq.s32.totalorder %v255, %v232
        %vm329 = vcmp.eq.s32.totalorder %v255, %v233
        %vm330 = vcmp.eq.s32.totalorder %v255, %v234
        %vm331 = vcmp.eq.s32.totalorder %v255, %v235
        %vm332 = vcmp.eq.s32.totalorder %v255, %v236
        %vm333 = vcmp.eq.s32.totalorder %v255, %v237
        %vm334 = vcmp.eq.s32.totalorder %v258, %v230
        %vm335 = vcmp.eq.s32.totalorder %v258, %v231
        %vm336 = vcmp.eq.s32.totalorder %v258, %v232
        %vm337 = vcmp.eq.s32.totalorder %v258, %v233
        %vm338 = vcmp.eq.s32.totalorder %v258, %v234
        %vm339 = vcmp.eq.s32.totalorder %v258, %v235
        %vm340 = vcmp.eq.s32.totalorder %v258, %v236
        %vm341 = vcmp.eq.s32.totalorder %v258, %v237
        %vm342 = vcmp.eq.s32.totalorder %v261, %v230
        %vm343 = vcmp.eq.s32.totalorder %v261, %v231
        %vm344 = vcmp.eq.s32.totalorder %v261, %v232
        %vm345 = vcmp.eq.s32.totalorder %v261, %v233
        %vm346 = vcmp.eq.s32.totalorder %v261, %v234
        %vm347 = vcmp.eq.s32.totalorder %v261, %v235
        %vm348 = vcmp.eq.s32.totalorder %v261, %v236
        %vm349 = vcmp.eq.s32.totalorder %v261, %v237
        %vm350 = vcmp.eq.s32.totalorder %v264, %v230
        %vm351 = vcmp.eq.s32.totalorder %v264, %v231
        %vm352 = vcmp.eq.s32.totalorder %v264, %v232
        %vm353 = vcmp.eq.s32.totalorder %v264, %v233
        %vm354 = vcmp.eq.s32.totalorder %v264, %v234
        %vm355 = vcmp.eq.s32.totalorder %v264, %v235
        %vm356 = vcmp.eq.s32.totalorder %v264, %v236
        %vm357 = vcmp.eq.s32.totalorder %v264, %v237
        %vm358 = vcmp.eq.s32.totalorder %v267, %v230
        %vm359 = vcmp.eq.s32.totalorder %v267, %v231
        %vm360 = vcmp.eq.s32.totalorder %v267, %v232
        %vm361 = vcmp.eq.s32.totalorder %v267, %v233
        %vm362 = vcmp.eq.s32.totalorder %v267, %v234
        %vm363 = vcmp.eq.s32.totalorder %v267, %v235
        %vm364 = vcmp.eq.s32.totalorder %v267, %v236
        %vm365 = vcmp.eq.s32.totalorder %v267, %v237
        %vm366 = vcmp.eq.s32.totalorder %v270, %v230
        %vm367 = vcmp.eq.s32.totalorder %v270, %v231
        %vm368 = vcmp.eq.s32.totalorder %v270, %v232
        %vm369 = vcmp.eq.s32.totalorder %v270, %v233
        %vm370 = vcmp.eq.s32.totalorder %v270, %v234
        %vm371 = vcmp.eq.s32.totalorder %v270, %v235
        %vm372 = vcmp.eq.s32.totalorder %v270, %v236
        %vm373 = vcmp.eq.s32.totalorder %v270, %v237
        %vm374 = vcmp.eq.s32.totalorder %v273, %v230
        %vm375 = vcmp.eq.s32.totalorder %v273, %v231
        %vm376 = vcmp.eq.s32.totalorder %v273, %v232
        %vm377 = vcmp.eq.s32.totalorder %v273, %v233
        %vm378 = vcmp.eq.s32.totalorder %v273, %v234
        %vm379 = vcmp.eq.s32.totalorder %v273, %v235
        %vm380 = vcmp.eq.s32.totalorder %v273, %v236
        %vm381 = vcmp.eq.s32.totalorder %v273, %v237
        %vm382 = vcmp.eq.s32.totalorder %v276, %v230
        %vm383 = vcmp.eq.s32.totalorder %v276, %v231
        %vm384 = vcmp.eq.s32.totalorder %v276, %v232
        %vm385 = vcmp.eq.s32.totalorder %v276, %v233
        %vm386 = vcmp.eq.s32.totalorder %v276, %v234
        %vm387 = vcmp.eq.s32.totalorder %v276, %v235
        %vm388 = vcmp.eq.s32.totalorder %v276, %v236
        %vm389 = vcmp.eq.s32.totalorder %v276, %v237
        %vm390 = vcmp.eq.s32.totalorder %v279, %v230
        %vm391 = vcmp.eq.s32.totalorder %v279, %v231
        %vm392 = vcmp.eq.s32.totalorder %v279, %v232
        %vm393 = vcmp.eq.s32.totalorder %v279, %v233
        %vm394 = vcmp.eq.s32.totalorder %v279, %v234
        %vm395 = vcmp.eq.s32.totalorder %v279, %v235
        %vm396 = vcmp.eq.s32.totalorder %v279, %v236
        %vm397 = vcmp.eq.s32.totalorder %v279, %v237
        %vm398 = vcmp.eq.s32.totalorder %v282, %v230
        %vm399 = vcmp.eq.s32.totalorder %v282, %v231
        %vm400 = vcmp.eq.s32.totalorder %v282, %v232
        %vm401 = vcmp.eq.s32.totalorder %v282, %v233
        %vm402 = vcmp.eq.s32.totalorder %v282, %v234
        %vm403 = vcmp.eq.s32.totalorder %v282, %v235
        %vm404 = vcmp.eq.s32.totalorder %v282, %v236
        %vm405 = vcmp.eq.s32.totalorder %v282, %v237
        %vm406 = vcmp.eq.s32.totalorder %v285, %v230
        %vm407 = vcmp.eq.s32.totalorder %v285, %v231
        %vm408 = vcmp.eq.s32.totalorder %v285, %v232
        %vm409 = vcmp.eq.s32.totalorder %v285, %v233
        %vm410 = vcmp.eq.s32.totalorder %v285, %v234
        %vm411 = vcmp.eq.s32.totalorder %v285, %v235
        %vm412 = vcmp.eq.s32.totalorder %v285, %v236
        %vm413 = vcmp.eq.s32.totalorder %v285, %v237
        %v414 = vld [vmem:[#allocation2] sm:$0xff]
        %v415 = vld [vmem:[#allocation2 + $0x8] sm:$0xff]
        %v416 = vld [vmem:[#allocation2 + $0x10] sm:$0xff]
        %v417 = vld [vmem:[#allocation2 + $0x18] sm:$0xff]
        %v418 = vld [vmem:[#allocation2 + $0x20] sm:$0xff]
        %v419 = vld [vmem:[#allocation2 + $0x28] sm:$0xff]
        %v420 = vld [vmem:[#allocation2 + $0x30] sm:$0xff]
        %v421 = vld [vmem:[#allocation2 + $0x38] sm:$0xff]
        %v422 = vld [vmem:[#allocation2 + $0x40] sm:$0xff]
        %v423 = vld [vmem:[#allocation2 + $0x48] sm:$0xff]
        %v424 = vld [vmem:[#allocation2 + $0x50] sm:$0xff]
        %v425 = vld [vmem:[#allocation2 + $0x58] sm:$0xff]
        %v426 = vld [vmem:[#allocation2 + $0x60] sm:$0xff]
        %v427 = vld [vmem:[#allocation2 + $0x68] sm:$0xff]
        %v428 = vld [vmem:[#allocation2 + $0x70] sm:$0xff]
        %v429 = vld [vmem:[#allocation2 + $0x78] sm:$0xff]
        %v430 = vsel %vm286, 1, 0
        %v431 = vsel %vm287, 1, 0
        %v432 = vsel %vm288, 1, 0
        %v433 = vsel %vm289, 1, 0
        %v434 = vsel %vm290, 1, 0
        %v435 = vsel %vm291, 1, 0
        %v436 = vsel %vm292, 1, 0
        %v437 = vsel %vm293, 1, 0
        %v438 = vsel %vm294, 1, 0
        %v439 = vsel %vm295, 1, 0
        %v440 = vsel %vm296, 1, 0
        %v441 = vsel %vm297, 1, 0
        %v442 = vsel %vm298, 1, 0
        %v443 = vsel %vm299, 1, 0
        %v444 = vsel %vm300, 1, 0
        %v445 = vsel %vm301, 1, 0
        %v446 = vsel %vm302, 1, 0
        %v447 = vsel %vm303, 1, 0
        %v448 = vsel %vm304, 1, 0
        %v449 = vsel %vm305, 1, 0
        %v450 = vsel %vm306, 1, 0
        %v451 = vsel %vm307, 1, 0
        %v452 = vsel %vm308, 1, 0
        %v453 = vsel %vm309, 1, 0
        %v454 = vsel %vm310, 1, 0
        %v455 = vsel %vm311, 1, 0
        %v456 = vsel %vm312, 1, 0
        %v457 = vsel %vm313, 1, 0
        %v458 = vsel %vm314, 1, 0
        %v459 = vsel %vm315, 1, 0
        %v460 = vsel %vm316, 1, 0
        %v461 = vsel %vm317, 1, 0
        %v462 = vsel %vm318, 1, 0
        %v463 = vsel %vm319, 1, 0
        %v464 = vsel %vm320, 1, 0
        %v465 = vsel %vm321, 1, 0
        %v466 = vsel %vm322, 1, 0
        %v467 = vsel %vm323, 1, 0
        %v468 = vsel %vm324, 1, 0
        %v469 = vsel %vm325, 1, 0
        %v470 = vsel %vm326, 1, 0
        %v471 = vsel %vm327, 1, 0
        %v472 = vsel %vm328, 1, 0
        %v473 = vsel %vm329, 1, 0
        %v474 = vsel %vm330, 1, 0
        %v475 = vsel %vm331, 1, 0
        %v476 = vsel %vm332, 1, 0
        %v477 = vsel %vm333, 1, 0
        %v478 = vsel %vm334, 1, 0
        %v479 = vsel %vm335, 1, 0
        %v480 = vsel %vm336, 1, 0
        %v481 = vsel %vm337, 1, 0
        %v482 = vsel %vm338, 1, 0
        %v483 = vsel %vm339, 1, 0
        %v484 = vsel %vm340, 1, 0
        %v485 = vsel %vm341, 1, 0
        %v486 = vsel %vm342, 1, 0
        %v487 = vsel %vm343, 1, 0
        %v488 = vsel %vm344, 1, 0
        %v489 = vsel %vm345, 1, 0
        %v490 = vsel %vm346, 1, 0
        %v491 = vsel %vm347, 1, 0
        %v492 = vsel %vm348, 1, 0
        %v493 = vsel %vm349, 1, 0
        %v494 = vsel %vm350, 1, 0
        %v495 = vsel %vm351, 1, 0
        %v496 = vsel %vm352, 1, 0
        %v497 = vsel %vm353, 1, 0
        %v498 = vsel %vm354, 1, 0
        %v499 = vsel %vm355, 1, 0
        %v500 = vsel %vm356, 1, 0
        %v501 = vsel %vm357, 1, 0
        %v502 = vsel %vm358, 1, 0
        %v503 = vsel %vm359, 1, 0
        %v504 = vsel %vm360, 1, 0
        %v505 = vsel %vm361, 1, 0
        %v506 = vsel %vm362, 1, 0
        %v507 = vsel %vm363, 1, 0
        %v508 = vsel %vm364, 1, 0
        %v509 = vsel %vm365, 1, 0
        %v510 = vsel %vm366, 1, 0
        %v511 = vsel %vm367, 1, 0
        %v512 = vsel %vm368, 1, 0
        %v513 = vsel %vm369, 1, 0
        %v514 = vsel %vm370, 1, 0
        %v515 = vsel %vm371, 1, 0
        %v516 = vsel %vm372, 1, 0
        %v517 = vsel %vm373, 1, 0
        %v518 = vsel %vm374, 1, 0
        %v519 = vsel %vm375, 1, 0
        %v520 = vsel %vm376, 1, 0
        %v521 = vsel %vm377, 1, 0
        %v522 = vsel %vm378, 1, 0
        %v523 = vsel %vm379, 1, 0
        %v524 = vsel %vm380, 1, 0
        %v525 = vsel %vm381, 1, 0
        %v526 = vsel %vm382, 1, 0
        %v527 = vsel %vm383, 1, 0
        %v528 = vsel %vm384, 1, 0
        %v529 = vsel %vm385, 1, 0
        %v530 = vsel %vm386, 1, 0
        %v531 = vsel %vm387, 1, 0
        %v532 = vsel %vm388, 1, 0
        %v533 = vsel %vm389, 1, 0
        %v534 = vsel %vm390, 1, 0
        %v535 = vsel %vm391, 1, 0
        %v536 = vsel %vm392, 1, 0
        %v537 = vsel %vm393, 1, 0
        %v538 = vsel %vm394, 1, 0
        %v539 = vsel %vm395, 1, 0
        %v540 = vsel %vm396, 1, 0
        %v541 = vsel %vm397, 1, 0
        %v542 = vsel %vm398, 1, 0
        %v543 = vsel %vm399, 1, 0
        %v544 = vsel %vm400, 1, 0
        %v545 = vsel %vm401, 1, 0
        %v546 = vsel %vm402, 1, 0
        %v547 = vsel %vm403, 1, 0
        %v548 = vsel %vm404, 1, 0
        %v549 = vsel %vm405, 1, 0
        %v550 = vsel %vm406, 1, 0
        %v551 = vsel %vm407, 1, 0
        %v552 = vsel %vm408, 1, 0
        %v553 = vsel %vm409, 1, 0
        %v554 = vsel %vm410, 1, 0
        %v555 = vsel %vm411, 1, 0
        %v556 = vsel %vm412, 1, 0
        %v557 = vsel %vm413, 1, 0
        %v558 = vcvt.s32.f32 %v430
        %v559 = vcvt.s32.f32 %v431
        %v560 = vcvt.s32.f32 %v432
        %v561 = vcvt.s32.f32 %v433
        %v562 = vcvt.s32.f32 %v434
        %v563 = vcvt.s32.f32 %v435
        %v564 = vcvt.s32.f32 %v436
        %v565 = vcvt.s32.f32 %v437
        %v566 = vcvt.s32.f32 %v438
        %v567 = vcvt.s32.f32 %v439
        %v568 = vcvt.s32.f32 %v440
        %v569 = vcvt.s32.f32 %v441
        %v570 = vcvt.s32.f32 %v442
        %v571 = vcvt.s32.f32 %v443
        %v572 = vcvt.s32.f32 %v444
        %v573 = vcvt.s32.f32 %v445
        %v574 = vcvt.s32.f32 %v446
        %v575 = vcvt.s32.f32 %v447
        %v576 = vcvt.s32.f32 %v448
        %v577 = vcvt.s32.f32 %v449
        %v578 = vcvt.s32.f32 %v450
        %v579 = vcvt.s32.f32 %v451
        %v580 = vcvt.s32.f32 %v452
        %v581 = vcvt.s32.f32 %v453
        %v582 = vcvt.s32.f32 %v454
        %v583 = vcvt.s32.f32 %v455
        %v584 = vcvt.s32.f32 %v456
        %v585 = vcvt.s32.f32 %v457
        %v586 = vcvt.s32.f32 %v458
        %v587 = vcvt.s32.f32 %v459
        %v588 = vcvt.s32.f32 %v460
        %v589 = vcvt.s32.f32 %v461
        %v590 = vcvt.s32.f32 %v462
        %v591 = vcvt.s32.f32 %v463
        %v592 = vcvt.s32.f32 %v464
        %v593 = vcvt.s32.f32 %v465
        %v594 = vcvt.s32.f32 %v466
        %v595 = vcvt.s32.f32 %v467
        %v596 = vcvt.s32.f32 %v468
        %v597 = vcvt.s32.f32 %v469
        %v598 = vcvt.s32.f32 %v470
        %v599 = vcvt.s32.f32 %v471
        %v600 = vcvt.s32.f32 %v472
        %v601 = vcvt.s32.f32 %v473
        %v602 = vcvt.s32.f32 %v474
        %v603 = vcvt.s32.f32 %v475
        %v604 = vcvt.s32.f32 %v476
        %v605 = vcvt.s32.f32 %v477
        %v606 = vcvt.s32.f32 %v478
        %v607 = vcvt.s32.f32 %v479
        %v608 = vcvt.s32.f32 %v480
        %v609 = vcvt.s32.f32 %v481
        %v610 = vcvt.s32.f32 %v482
        %v611 = vcvt.s32.f32 %v483
        %v612 = vcvt.s32.f32 %v484
        %v613 = vcvt.s32.f32 %v485
        %v614 = vcvt.s32.f32 %v486
        %v615 = vcvt.s32.f32 %v487
        %v616 = vcvt.s32.f32 %v488
        %v617 = vcvt.s32.f32 %v489
        %v618 = vcvt.s32.f32 %v490
        %v619 = vcvt.s32.f32 %v491
        %v620 = vcvt.s32.f32 %v492
        %v621 = vcvt.s32.f32 %v493
        %v622 = vcvt.s32.f32 %v494
        %v623 = vcvt.s32.f32 %v495
        %v624 = vcvt.s32.f32 %v496
        %v625 = vcvt.s32.f32 %v497
        %v626 = vcvt.s32.f32 %v498
        %v627 = vcvt.s32.f32 %v499
        %v628 = vcvt.s32.f32 %v500
        %v629 = vcvt.s32.f32 %v501
        %v630 = vcvt.s32.f32 %v502
        %v631 = vcvt.s32.f32 %v503
        %v632 = vcvt.s32.f32 %v504
        %v633 = vcvt.s32.f32 %v505
        %v634 = vcvt.s32.f32 %v506
        %v635 = vcvt.s32.f32 %v507
        %v636 = vcvt.s32.f32 %v508
        %v637 = vcvt.s32.f32 %v509
        %v638 = vcvt.s32.f32 %v510
        %v639 = vcvt.s32.f32 %v511
        %v640 = vcvt.s32.f32 %v512
        %v641 = vcvt.s32.f32 %v513
        %v642 = vcvt.s32.f32 %v514
        %v643 = vcvt.s32.f32 %v515
        %v644 = vcvt.s32.f32 %v516
        %v645 = vcvt.s32.f32 %v517
        %v646 = vcvt.s32.f32 %v518
        %v647 = vcvt.s32.f32 %v519
        %v648 = vcvt.s32.f32 %v520
        %v649 = vcvt.s32.f32 %v521
        %v650 = vcvt.s32.f32 %v522
        %v651 = vcvt.s32.f32 %v523
        %v652 = vcvt.s32.f32 %v524
        %v653 = vcvt.s32.f32 %v525
        %v654 = vcvt.s32.f32 %v526
        %v655 = vcvt.s32.f32 %v527
        %v656 = vcvt.s32.f32 %v528
        %v657 = vcvt.s32.f32 %v529
        %v658 = vcvt.s32.f32 %v530
        %v659 = vcvt.s32.f32 %v531
        %v660 = vcvt.s32.f32 %v532
        %v661 = vcvt.s32.f32 %v533
        %v662 = vcvt.s32.f32 %v534
        %v663 = vcvt.s32.f32 %v535
        %v664 = vcvt.s32.f32 %v536
        %v665 = vcvt.s32.f32 %v537
        %v666 = vcvt.s32.f32 %v538
        %v667 = vcvt.s32.f32 %v539
        %v668 = vcvt.s32.f32 %v540
        %v669 = vcvt.s32.f32 %v541
        %v670 = vcvt.s32.f32 %v542
        %v671 = vcvt.s32.f32 %v543
        %v672 = vcvt.s32.f32 %v544
        %v673 = vcvt.s32.f32 %v545
        %v674 = vcvt.s32.f32 %v546
        %v675 = vcvt.s32.f32 %v547
        %v676 = vcvt.s32.f32 %v548
        %v677 = vcvt.s32.f32 %v549
        %v678 = vcvt.s32.f32 %v550
        %v679 = vcvt.s32.f32 %v551
        %v680 = vcvt.s32.f32 %v552
        %v681 = vcvt.s32.f32 %v553
        %v682 = vcvt.s32.f32 %v554
        %v683 = vcvt.s32.f32 %v555
        %v684 = vcvt.s32.f32 %v556
        %v685 = vcvt.s32.f32 %v557
        %v686 = vld [vmem:[%s172] sm:$0xff]
        %v688 = vlaneseq
        %v689 = vshrl.u32 %v688, 7
        %v690 = vsub.s32 0, %v689
        %v691 = vrot.slane %v686, %v690
        %v692 = vlaneseq
        %v693 = vshrl.u32 %v692, 7
        %v694 = vsub.s32 1, %v693
        %v695 = vrot.slane %v686, %v694
        %v696 = vlaneseq
        %v697 = vshrl.u32 %v696, 7
        %v698 = vsub.s32 2, %v697
        %v699 = vrot.slane %v686, %v698
        %v700 = vlaneseq
        %v701 = vshrl.u32 %v700, 7
        %v702 = vsub.s32 3, %v701
        %v703 = vrot.slane %v686, %v702
        %v704 = vlaneseq
        %v705 = vshrl.u32 %v704, 7
        %v706 = vsub.s32 4, %v705
        %v707 = vrot.slane %v686, %v706
        %v708 = vlaneseq
        %v709 = vshrl.u32 %v708, 7
        %v710 = vsub.s32 5, %v709
        %v711 = vrot.slane %v686, %v710
        %v712 = vlaneseq
        %v713 = vshrl.u32 %v712, 7
        %v714 = vsub.s32 6, %v713
        %v715 = vrot.slane %v686, %v714
        %v716 = vlaneseq
        %v717 = vshrl.u32 %v716, 7
        %v718 = vsub.s32 7, %v717
        %v719 = vrot.slane %v686, %v718
        %v728 = vmul.f32 %v558, %v691
        %v729 = vmul.f32 %v559, %v695
        %v730 = vmul.f32 %v560, %v699
        %v731 = vmul.f32 %v561, %v703
        %v732 = vmul.f32 %v562, %v707
        %v733 = vmul.f32 %v563, %v711
        %v734 = vmul.f32 %v564, %v715
        %v735 = vmul.f32 %v565, %v719
        %v736 = vmul.f32 %v566, %v691
        %v737 = vmul.f32 %v567, %v695
        %v738 = vmul.f32 %v568, %v699
        %v739 = vmul.f32 %v569, %v703
        %v740 = vmul.f32 %v570, %v707
        %v741 = vmul.f32 %v571, %v711
        %v742 = vmul.f32 %v572, %v715
        %v743 = vmul.f32 %v573, %v719
        %v744 = vmul.f32 %v574, %v691
        %v745 = vmul.f32 %v575, %v695
        %v746 = vmul.f32 %v576, %v699
        %v747 = vmul.f32 %v577, %v703
        %v748 = vmul.f32 %v578, %v707
        %v749 = vmul.f32 %v579, %v711
        %v750 = vmul.f32 %v580, %v715
        %v751 = vmul.f32 %v581, %v719
        %v752 = vmul.f32 %v582, %v691
        %v753 = vmul.f32 %v583, %v695
        %v754 = vmul.f32 %v584, %v699
        %v755 = vmul.f32 %v585, %v703
        %v756 = vmul.f32 %v586, %v707
        %v757 = vmul.f32 %v587, %v711
        %v758 = vmul.f32 %v588, %v715
        %v759 = vmul.f32 %v589, %v719
        %v760 = vmul.f32 %v590, %v691
        %v761 = vmul.f32 %v591, %v695
        %v762 = vmul.f32 %v592, %v699
        %v763 = vmul.f32 %v593, %v703
        %v764 = vmul.f32 %v594, %v707
        %v765 = vmul.f32 %v595, %v711
        %v766 = vmul.f32 %v596, %v715
        %v767 = vmul.f32 %v597, %v719
        %v768 = vmul.f32 %v598, %v691
        %v769 = vmul.f32 %v599, %v695
        %v770 = vmul.f32 %v600, %v699
        %v771 = vmul.f32 %v601, %v703
        %v772 = vmul.f32 %v602, %v707
        %v773 = vmul.f32 %v603, %v711
        %v774 = vmul.f32 %v604, %v715
        %v775 = vmul.f32 %v605, %v719
        %v776 = vmul.f32 %v606, %v691
        %v777 = vmul.f32 %v607, %v695
        %v778 = vmul.f32 %v608, %v699
        %v779 = vmul.f32 %v609, %v703
        %v780 = vmul.f32 %v610, %v707
        %v781 = vmul.f32 %v611, %v711
        %v782 = vmul.f32 %v612, %v715
        %v783 = vmul.f32 %v613, %v719
        %v784 = vmul.f32 %v614, %v691
        %v785 = vmul.f32 %v615, %v695
        %v786 = vmul.f32 %v616, %v699
        %v787 = vmul.f32 %v617, %v703
        %v788 = vmul.f32 %v618, %v707
        %v789 = vmul.f32 %v619, %v711
        %v790 = vmul.f32 %v620, %v715
        %v791 = vmul.f32 %v621, %v719
        %v792 = vmul.f32 %v622, %v691
        %v793 = vmul.f32 %v623, %v695
        %v794 = vmul.f32 %v624, %v699
        %v795 = vmul.f32 %v625, %v703
        %v796 = vmul.f32 %v626, %v707
        %v797 = vmul.f32 %v627, %v711
        %v798 = vmul.f32 %v628, %v715
        %v799 = vmul.f32 %v629, %v719
        %v800 = vmul.f32 %v630, %v691
        %v801 = vmul.f32 %v631, %v695
        %v802 = vmul.f32 %v632, %v699
        %v803 = vmul.f32 %v633, %v703
        %v804 = vmul.f32 %v634, %v707
        %v805 = vmul.f32 %v635, %v711
        %v806 = vmul.f32 %v636, %v715
        %v807 = vmul.f32 %v637, %v719
        %v808 = vmul.f32 %v638, %v691
        %v809 = vmul.f32 %v639, %v695
        %v810 = vmul.f32 %v640, %v699
        %v811 = vmul.f32 %v641, %v703
        %v812 = vmul.f32 %v642, %v707
        %v813 = vmul.f32 %v643, %v711
        %v814 = vmul.f32 %v644, %v715
        %v815 = vmul.f32 %v645, %v719
        %v816 = vmul.f32 %v646, %v691
        %v817 = vmul.f32 %v647, %v695
        %v818 = vmul.f32 %v648, %v699
        %v819 = vmul.f32 %v649, %v703
        %v820 = vmul.f32 %v650, %v707
        %v821 = vmul.f32 %v651, %v711
        %v822 = vmul.f32 %v652, %v715
        %v823 = vmul.f32 %v653, %v719
        %v824 = vmul.f32 %v654, %v691
        %v825 = vmul.f32 %v655, %v695
        %v826 = vmul.f32 %v656, %v699
        %v827 = vmul.f32 %v657, %v703
        %v828 = vmul.f32 %v658, %v707
        %v829 = vmul.f32 %v659, %v711
        %v830 = vmul.f32 %v660, %v715
        %v831 = vmul.f32 %v661, %v719
        %v832 = vmul.f32 %v662, %v691
        %v833 = vmul.f32 %v663, %v695
        %v834 = vmul.f32 %v664, %v699
        %v835 = vmul.f32 %v665, %v703
        %v836 = vmul.f32 %v666, %v707
        %v837 = vmul.f32 %v667, %v711
        %v838 = vmul.f32 %v668, %v715
        %v839 = vmul.f32 %v669, %v719
        %v840 = vmul.f32 %v670, %v691
        %v841 = vmul.f32 %v671, %v695
        %v842 = vmul.f32 %v672, %v699
        %v843 = vmul.f32 %v673, %v703
        %v844 = vmul.f32 %v674, %v707
        %v845 = vmul.f32 %v675, %v711
        %v846 = vmul.f32 %v676, %v715
        %v847 = vmul.f32 %v677, %v719
        %v848 = vmul.f32 %v678, %v691
        %v849 = vmul.f32 %v679, %v695
        %v850 = vmul.f32 %v680, %v699
        %v851 = vmul.f32 %v681, %v703
        %v852 = vmul.f32 %v682, %v707
        %v853 = vmul.f32 %v683, %v711
        %v854 = vmul.f32 %v684, %v715
        %v855 = vmul.f32 %v685, %v719
        %v856 = vadd.f32 %v728, %v729
        %v857 = vadd.f32 %v856, %v730
        %v858 = vadd.f32 %v857, %v731
        %v859 = vadd.f32 %v858, %v732
        %v860 = vadd.f32 %v859, %v733
        %v861 = vadd.f32 %v860, %v734
        %v862 = vadd.f32 %v861, %v735
        %863 = vadd.xlane.f32.xlu0 %v862
        %v864 = vpop.xlane.xlu0 %863
        %v865 = vadd.f32 %v736, %v737
        %v866 = vadd.f32 %v865, %v738
        %v867 = vadd.f32 %v866, %v739
        %v868 = vadd.f32 %v867, %v740
        %v869 = vadd.f32 %v868, %v741
        %v870 = vadd.f32 %v869, %v742
        %v871 = vadd.f32 %v870, %v743
        %872 = vadd.xlane.f32.xlu0 %v871
        %v873 = vpop.xlane.xlu0 %872
        %v874 = vadd.f32 %v744, %v745
        %v875 = vadd.f32 %v874, %v746
        %v876 = vadd.f32 %v875, %v747
        %v877 = vadd.f32 %v876, %v748
        %v878 = vadd.f32 %v877, %v749
        %v879 = vadd.f32 %v878, %v750
        %v880 = vadd.f32 %v879, %v751
        %881 = vadd.xlane.f32.xlu0 %v880
        %v882 = vpop.xlane.xlu0 %881
        %v883 = vadd.f32 %v752, %v753
        %v884 = vadd.f32 %v883, %v754
        %v885 = vadd.f32 %v884, %v755
        %v886 = vadd.f32 %v885, %v756
        %v887 = vadd.f32 %v886, %v757
        %v888 = vadd.f32 %v887, %v758
        %v889 = vadd.f32 %v888, %v759
        %890 = vadd.xlane.f32.xlu0 %v889
        %v891 = vpop.xlane.xlu0 %890
        %v892 = vadd.f32 %v760, %v761
        %v893 = vadd.f32 %v892, %v762
        %v894 = vadd.f32 %v893, %v763
        %v895 = vadd.f32 %v894, %v764
        %v896 = vadd.f32 %v895, %v765
        %v897 = vadd.f32 %v896, %v766
        %v898 = vadd.f32 %v897, %v767
        %899 = vadd.xlane.f32.xlu0 %v898
        %v900 = vpop.xlane.xlu0 %899
        %v901 = vadd.f32 %v768, %v769
        %v902 = vadd.f32 %v901, %v770
        %v903 = vadd.f32 %v902, %v771
        %v904 = vadd.f32 %v903, %v772
        %v905 = vadd.f32 %v904, %v773
        %v906 = vadd.f32 %v905, %v774
        %v907 = vadd.f32 %v906, %v775
        %908 = vadd.xlane.f32.xlu0 %v907
        %v909 = vpop.xlane.xlu0 %908
        %v910 = vadd.f32 %v776, %v777
        %v911 = vadd.f32 %v910, %v778
        %v912 = vadd.f32 %v911, %v779
        %v913 = vadd.f32 %v912, %v780
        %v914 = vadd.f32 %v913, %v781
        %v915 = vadd.f32 %v914, %v782
        %v916 = vadd.f32 %v915, %v783
        %917 = vadd.xlane.f32.xlu0 %v916
        %v918 = vpop.xlane.xlu0 %917
        %v919 = vadd.f32 %v784, %v785
        %v920 = vadd.f32 %v919, %v786
        %v921 = vadd.f32 %v920, %v787
        %v922 = vadd.f32 %v921, %v788
        %v923 = vadd.f32 %v922, %v789
        %v924 = vadd.f32 %v923, %v790
        %v925 = vadd.f32 %v924, %v791
        %926 = vadd.xlane.f32.xlu0 %v925
        %v927 = vpop.xlane.xlu0 %926
        %v928 = vadd.f32 %v792, %v793
        %v929 = vadd.f32 %v928, %v794
        %v930 = vadd.f32 %v929, %v795
        %v931 = vadd.f32 %v930, %v796
        %v932 = vadd.f32 %v931, %v797
        %v933 = vadd.f32 %v932, %v798
        %v934 = vadd.f32 %v933, %v799
        %935 = vadd.xlane.f32.xlu0 %v934
        %v936 = vpop.xlane.xlu0 %935
        %v937 = vadd.f32 %v800, %v801
        %v938 = vadd.f32 %v937, %v802
        %v939 = vadd.f32 %v938, %v803
        %v940 = vadd.f32 %v939, %v804
        %v941 = vadd.f32 %v940, %v805
        %v942 = vadd.f32 %v941, %v806
        %v943 = vadd.f32 %v942, %v807
        %944 = vadd.xlane.f32.xlu0 %v943
        %v945 = vpop.xlane.xlu0 %944
        %v946 = vadd.f32 %v808, %v809
        %v947 = vadd.f32 %v946, %v810
        %v948 = vadd.f32 %v947, %v811
        %v949 = vadd.f32 %v948, %v812
        %v950 = vadd.f32 %v949, %v813
        %v951 = vadd.f32 %v950, %v814
        %v952 = vadd.f32 %v951, %v815
        %953 = vadd.xlane.f32.xlu0 %v952
        %v954 = vpop.xlane.xlu0 %953
        %v955 = vadd.f32 %v816, %v817
        %v956 = vadd.f32 %v955, %v818
        %v957 = vadd.f32 %v956, %v819
        %v958 = vadd.f32 %v957, %v820
        %v959 = vadd.f32 %v958, %v821
        %v960 = vadd.f32 %v959, %v822
        %v961 = vadd.f32 %v960, %v823
        %962 = vadd.xlane.f32.xlu0 %v961
        %v963 = vpop.xlane.xlu0 %962
        %v964 = vadd.f32 %v824, %v825
        %v965 = vadd.f32 %v964, %v826
        %v966 = vadd.f32 %v965, %v827
        %v967 = vadd.f32 %v966, %v828
        %v968 = vadd.f32 %v967, %v829
        %v969 = vadd.f32 %v968, %v830
        %v970 = vadd.f32 %v969, %v831
        %971 = vadd.xlane.f32.xlu0 %v970
        %v972 = vpop.xlane.xlu0 %971
        %v973 = vadd.f32 %v832, %v833
        %v974 = vadd.f32 %v973, %v834
        %v975 = vadd.f32 %v974, %v835
        %v976 = vadd.f32 %v975, %v836
        %v977 = vadd.f32 %v976, %v837
        %v978 = vadd.f32 %v977, %v838
        %v979 = vadd.f32 %v978, %v839
        %980 = vadd.xlane.f32.xlu0 %v979
        %v981 = vpop.xlane.xlu0 %980
        %v982 = vadd.f32 %v840, %v841
        %v983 = vadd.f32 %v982, %v842
        %v984 = vadd.f32 %v983, %v843
        %v985 = vadd.f32 %v984, %v844
        %v986 = vadd.f32 %v985, %v845
        %v987 = vadd.f32 %v986, %v846
        %v988 = vadd.f32 %v987, %v847
        %989 = vadd.xlane.f32.xlu0 %v988
        %v990 = vpop.xlane.xlu0 %989
        %v991 = vadd.f32 %v848, %v849
        %v992 = vadd.f32 %v991, %v850
        %v993 = vadd.f32 %v992, %v851
        %v994 = vadd.f32 %v993, %v852
        %v995 = vadd.f32 %v994, %v853
        %v996 = vadd.f32 %v995, %v854
        %v997 = vadd.f32 %v996, %v855
        %998 = vadd.xlane.f32.xlu0 %v997
        %v999 = vpop.xlane.xlu0 %998
        %v1000 = vadd.f32 %v414, %v864
        %v1001 = vadd.f32 %v415, %v873
        %v1002 = vadd.f32 %v416, %v882
        %v1003 = vadd.f32 %v417, %v891
        %v1004 = vadd.f32 %v418, %v900
        %v1005 = vadd.f32 %v419, %v909
        %v1006 = vadd.f32 %v420, %v918
        %v1007 = vadd.f32 %v421, %v927
        %v1008 = vadd.f32 %v422, %v936
        %v1009 = vadd.f32 %v423, %v945
        %v1010 = vadd.f32 %v424, %v954
        %v1011 = vadd.f32 %v425, %v963
        %v1012 = vadd.f32 %v426, %v972
        %v1013 = vadd.f32 %v427, %v981
        %v1014 = vadd.f32 %v428, %v990
        %v1015 = vadd.f32 %v429, %v999
        %vm1016 = vcmask 7168
        %1017 = vst.msk [vmem:[#allocation2] sm:$0xff] %vm1016, %v1000
        %1018 = vst.msk [vmem:[#allocation2 + $0x8] sm:$0xff] %vm1016, %v1001
        %1019 = vst.msk [vmem:[#allocation2 + $0x10] sm:$0xff] %vm1016, %v1002
        %1020 = vst.msk [vmem:[#allocation2 + $0x18] sm:$0xff] %vm1016, %v1003
        %1021 = vst.msk [vmem:[#allocation2 + $0x20] sm:$0xff] %vm1016, %v1004
        %1022 = vst.msk [vmem:[#allocation2 + $0x28] sm:$0xff] %vm1016, %v1005
        %1023 = vst.msk [vmem:[#allocation2 + $0x30] sm:$0xff] %vm1016, %v1006
        %1024 = vst.msk [vmem:[#allocation2 + $0x38] sm:$0xff] %vm1016, %v1007
        %1025 = vst.msk [vmem:[#allocation2 + $0x40] sm:$0xff] %vm1016, %v1008
        %1026 = vst.msk [vmem:[#allocation2 + $0x48] sm:$0xff] %vm1016, %v1009
        %1027 = vst.msk [vmem:[#allocation2 + $0x50] sm:$0xff] %vm1016, %v1010
        %1028 = vst.msk [vmem:[#allocation2 + $0x58] sm:$0xff] %vm1016, %v1011
        %1029 = vst.msk [vmem:[#allocation2 + $0x60] sm:$0xff] %vm1016, %v1012
        %1030 = vst.msk [vmem:[#allocation2 + $0x68] sm:$0xff] %vm1016, %v1013
        %1031 = vst.msk [vmem:[#allocation2 + $0x70] sm:$0xff] %vm1016, %v1014
        %1032 = vst.msk [vmem:[#allocation2 + $0x78] sm:$0xff] %vm1016, %v1015
        // Predicated region
        $region33: #{_popularity_forward_padded.1} parent=27 // pred_check
          %p1033 = pneg %p174
        $region34: #{_popularity_forward_padded.1} parent=27 // pred_check_branch
          %1035 = sbr.rel (%p1033) target = $region36
        $region35: #{_popularity_forward_padded.1} parent=27 // pred_region
          %v1036 = vld [vmem:[#allocation2] sm:$0xff]
          %v1037 = vld [vmem:[#allocation2 + $0x8] sm:$0xff]
          %v1038 = vld [vmem:[#allocation2 + $0x10] sm:$0xff]
          %v1039 = vld [vmem:[#allocation2 + $0x18] sm:$0xff]
          %v1040 = vld [vmem:[#allocation2 + $0x20] sm:$0xff]
          %v1041 = vld [vmem:[#allocation2 + $0x28] sm:$0xff]
          %v1042 = vld [vmem:[#allocation2 + $0x30] sm:$0xff]
          %v1043 = vld [vmem:[#allocation2 + $0x38] sm:$0xff]
          %v1044 = vld [vmem:[#allocation2 + $0x40] sm:$0xff]
          %v1045 = vld [vmem:[#allocation2 + $0x48] sm:$0xff]
          %v1046 = vld [vmem:[#allocation2 + $0x50] sm:$0xff]
          %v1047 = vld [vmem:[#allocation2 + $0x58] sm:$0xff]
          %v1048 = vld [vmem:[#allocation2 + $0x60] sm:$0xff]
          %v1049 = vld [vmem:[#allocation2 + $0x68] sm:$0xff]
          %v1050 = vld [vmem:[#allocation2 + $0x70] sm:$0xff]
          %v1051 = vld [vmem:[#allocation2 + $0x78] sm:$0xff]
          %1052 = vxpose.xlu0.b32.start [1/16] %v1036, 128
          %1053 = vxpose.xlu0.b32.cont [2/16] %v1037, 128
          %1054 = vxpose.xlu0.b32.cont [3/16] %v1038, 128
          %1055 = vxpose.xlu0.b32.cont [4/16] %v1039, 128
          %1056 = vxpose.xlu0.b32.cont [5/16] %v1040, 128
          %1057 = vxpose.xlu0.b32.cont [6/16] %v1041, 128
          %1058 = vxpose.xlu0.b32.cont [7/16] %v1042, 128
          %1059 = vxpose.xlu0.b32.cont [8/16] %v1043, 128
          %1060 = vxpose.xlu0.b32.cont [9/16] %v1044, 128
          %1061 = vxpose.xlu0.b32.cont [10/16] %v1045, 128
          %1062 = vxpose.xlu0.b32.cont [11/16] %v1046, 128
          %1063 = vxpose.xlu0.b32.cont [12/16] %v1047, 128
          %1064 = vxpose.xlu0.b32.cont [13/16] %v1048, 128
          %1065 = vxpose.xlu0.b32.cont [14/16] %v1049, 128
          %1066 = vxpose.xlu0.b32.cont [15/16] %v1050, 128
          %1067 = vxpose.xlu0.b32.end [16/16] %v1051, 128
          %v1068 = vpop.trf.xlu0
          %v1069 = vpop.trf.xlu0
          %v1070 = vpop.trf.xlu0
          %v1071 = vpop.trf.xlu0
          %v1072 = vpop.trf.xlu0
          %v1073 = vpop.trf.xlu0
          %v1074 = vpop.trf.xlu0
          %v1075 = vpop.trf.xlu0
          %v1076 = vpop.trf.xlu0
          %v1077 = vpop.trf.xlu0
          %v1078 = vpop.trf.xlu0
          %v1079 = vpop.trf.xlu0
          %v1080 = vpop.trf.xlu0
          %v1081 = vpop.trf.xlu0
          %v1082 = vpop.trf.xlu0
          %v1083 = vpop.trf.xlu0
          %1084 = vst [vmem:[%s162] sm:$0x1] %v1068
        $region36: #{_popularity_forward_padded.1} parent=27 // pred_fallthru
          _
        %s1085 = sand.u32 %s88, 1
        %s1086 = scalar_lea.sflag [#allocation4], %s1085
        %s1087 = sand.u32 %s88, 1
        %s1088 = scalar_lea.vmem [#allocation3], %s1087
        // Predicated region
        $region37: #{_popularity_forward_padded.1} parent=27 // pred_check
          %p1089 = pneg %p98
        $region38: #{_popularity_forward_padded.1} parent=27 // pred_check_branch
          %1091 = sbr.rel (%p1089) target = $region40
        $region39: #{_popularity_forward_padded.1} parent=27 // pred_region
          %s1093 = ssub.s32 16, 16
          %1094 = vsyncadd %s1086, %s1093
          %s1095 = smul.addr %s20, 16
          %s1096 = scalar_lea.hbm %s2, %s1095
          %s1098 = sshll.u32 %s1088, 4
          %s1099 = int_to_ptr.vmem [resolvable:$true] %s1098
          %1101 = dma.vmem_to_hbm [thread:$0]  %s1099, 16, %s1096, %s1086
        $region40: #{_popularity_forward_padded.1} parent=27 // pred_fallthru
          _
      $region28: #{_popularity_forward_padded.1} parent=5 // pred_fallthru
        _
      %p1102 = scmp.le.s32.totalorder 2, %s11
      // Predicated region
      $region41: #{_popularity_forward_padded.1} parent=5 // pred_check
        %p1103 = pneg %p1102
      $region42: #{_popularity_forward_padded.1} parent=5 // pred_check_branch
        %1105 = sbr.rel (%p1103) target = $region44
      $region43: #{_popularity_forward_padded.1} parent=5 // pred_region
        %s1106 = ssub.s32 %s11, 2
        // Predicated region
        $region45: #{_popularity_forward_padded.1} parent=43 // pred_check
          %p1107 = pneg %p104
        $region46: #{_popularity_forward_padded.1} parent=43 // pred_check_branch
          %1109 = sbr.rel (%p1107) target = $region48
        $region47: #{_popularity_forward_padded.1} parent=43 // pred_region
          %s1110 = sand.u32 %s89, 1
          %s1111 = scalar_lea.sflag [#allocation4], %s1110
          %s1112 = sand.u32 %s89, 1
          %s1113 = scalar_lea.vmem [#allocation3], %s1112
          %1114 = dma.done %s1111, 16
        $region48: #{_popularity_forward_padded.1} parent=43 // pred_fallthru
          _
      $region44: #{_popularity_forward_padded.1} parent=5 // pred_fallthru
        _
    $region6: #{_popularity_forward_padded.1} parent=1 // loop_footer
      %s15 = sadd.s32 1, %s11
    $region7: #{_popularity_forward_padded.1} parent=1 // loop_footer_branch
      %10 = sbr.rel target = $region3
    $region8: #{_popularity_forward_padded.1} parent=1 // loop_exit
      _
    %1115 = vsyncpa [#allocation4], 1
    %s1116 = scalar_lea.sflag [#allocation4], 1
    %1117 = vsyncpa %s1116, 1

</llo_original>
